<compile_context>
chip_gen: v7x
topology: tpu7x:2x2x1
jax: 0.10.0
libtpu: 0.0.40
codegen_flags: <defaults>
</compile_context>

<pallas_src>
import functools

import jax
import jax.numpy as jnp
from jax import lax
from jax.experimental import pallas as pl
from jax.experimental.pallas import tpu as pltpu

_EPS = 1e-5
_LANES = 128


def _elu_bn_kernel(x_ref, gamma_ref, beta_ref, o_ref, *, inv_m):
    # x_ref: (N, Ct, HW); gamma_ref/beta_ref: (Ct, 128); o_ref: (N, Ct, HW)
    x = x_ref[...].astype(jnp.float32)

    # ELU(alpha=1): x if x > 0 else exp(x) - 1.  Clamp the exp argument so the
    # unselected branch never overflows.
    # TODO(synk): expm1 would be marginally more accurate near 0; exp(x)-1 is
    # within ~1e-7 abs in f32 and keeps the Mosaic lowering simple/portable.
    e = jnp.where(x > 0, x, jnp.exp(jnp.minimum(x, 0.0)) - 1.0)

    # Per-channel batch statistics as running sums; divide by M once at the end.
    sum_n = jnp.sum(e, axis=0)                       # (Ct, HW) cheap cross-vreg adds
    sqsum_n = jnp.sum(e * e, axis=0)                 # (Ct, HW)
    s1 = jnp.sum(sum_n, axis=-1, keepdims=True)      # (Ct, 1)  single XLU lane reduce
    s2 = jnp.sum(sqsum_n, axis=-1, keepdims=True)    # (Ct, 1)

    mu = s1 * inv_m                                  # (Ct, 1)
    var = jnp.maximum(s2 * inv_m - mu * mu, 0.0)     # clamp cancellation
    inv_std = lax.rsqrt(var + _EPS)                  # EUP slot (otherwise idle)

    gamma = gamma_ref[...][:, :1]                    # (Ct, 1)
    beta = beta_ref[...][:, :1]                      # (Ct, 1)
    scale = gamma * inv_std                          # (Ct, 1)
    shift = beta - mu * scale                        # (Ct, 1)

    # One fused multiply-add per element.
    y = e * scale[None, :, :] + shift[None, :, :]
    o_ref[...] = y.astype(o_ref.dtype)


def _pick_channel_tile(C, N, HW, itemsize, budget_bytes=12 << 20):
    """Largest channel tile (multiple of 8 dividing C, or C itself) whose
    double-buffered input+output blocks fit in `budget_bytes` of VMEM."""
    cands = [c for c in range(8, C, 8) if C % c == 0] + [C]
    per_channel = 2 * 2 * N * HW * itemsize          # in + out, double-buffered
    fitting = [c for c in cands if c * per_channel <= budget_bytes]
    return max(fitting) if fitting else min(cands)


def elu_batchnorm2d(x, gamma, beta):
    """ELU -> BatchNorm2d (train-mode stats). x: [N, C, H, W]; gamma, beta: [C]."""
    N, C, H, W = x.shape
    HW = H * W
    M = N * HW
    itemsize = jnp.dtype(x.dtype).itemsize

    # Free views / tiny param materializations — no NCHW transpose anywhere.
    x3 = x.reshape(N, C, HW)
    g2 = jnp.broadcast_to(gamma.astype(jnp.float32).reshape(C, 1), (C, _LANES))
    b2 = jnp.broadcast_to(beta.astype(jnp.float32).reshape(C, 1), (C, _LANES))

    ct = _pick_channel_tile(C, N, HW, itemsize)
    grid = (C // ct,)

    block_bytes = N * ct * HW * itemsize
    # in + out double-buffered, plus slack; capped under v7x's 64 MiB physical.
    vmem_limit = int(min(max(4 * block_bytes + (2 << 20), 16 << 20), 48 << 20))

    kernel = functools.partial(_elu_bn_kernel, inv_m=1.0 / M)

    y3 = pl.pallas_call(
        kernel,
        out_shape=jax.ShapeDtypeStruct((N, C, HW), x.dtype),
        grid=grid,
        in_specs=[
            pl.BlockSpec((N, ct, HW), lambda c: (0, c, 0)),
            pl.BlockSpec((ct, _LANES), lambda c: (c, 0)),
            pl.BlockSpec((ct, _LANES), lambda c: (c, 0)),
        ],
        out_specs=pl.BlockSpec((N, ct, HW), lambda c: (0, c, 0)),
        compiler_params=pltpu.CompilerParams(
            dimension_semantics=("parallel",),
            vmem_limit_bytes=vmem_limit,
        ),
    )(x3, g2, b2)

    return y3.reshape(N, C, H, W)


def _reference(x, gamma, beta):
    e = jnp.where(x > 0, x, jnp.exp(jnp.minimum(x, 0.0)) - 1.0)
    mu = jnp.mean(e, axis=(0, 2, 3), keepdims=True)
    var = jnp.mean((e - mu) ** 2, axis=(0, 2, 3), keepdims=True)
    g = gamma.reshape(1, -1, 1, 1)
    b = beta.reshape(1, -1, 1, 1)
    return (e - mu) / jnp.sqrt(var + _EPS) * g + b


if __name__ == "__main__":
    key = jax.random.PRNGKey(0)
    N, C, H, W = 2, 4, 16, 16          # filters = C = 4 for the small test

    x = jax.random.normal(key, (N, C, H, W), dtype=jnp.float32)

    # Deterministic affine parameters (PyTorch default is gamma=1, beta=0;
    # perturb slightly so the affine path is exercised).
    gamma = jnp.ones((C,), jnp.float32) + 0.1 * jnp.arange(C, dtype=jnp.float32)
    beta = 0.05 * jnp.arange(C, dtype=jnp.float32)

    y = elu_batchnorm2d(x, gamma, beta)
    jax.block_until_ready(y)

    y_ref = _reference(x, gamma, beta)
    assert y.shape == (N, C, H, W)
    assert jnp.allclose(y, y_ref, atol=1e-4, rtol=1e-4)

    print("KERNEL_OK")
</pallas_src>

<mosaic_0001>
module attributes {stable_mosaic.version = 11 : i64} {
  func.func @_elu_bn_kernel(%arg0: i32, %arg1: memref<2x4x256xf32, #tpu.memory_space<vmem>>, %arg2: memref<4x128xf32, #tpu.memory_space<vmem>>, %arg3: memref<4x128xf32, #tpu.memory_space<vmem>>, %arg4: memref<2x4x256xf32, #tpu.memory_space<vmem>>) attributes {dimension_semantics = [#tpu.dimension_semantics<parallel>], iteration_bounds = array<i64: 1>, scalar_prefetch = 0 : i64, scratch_operands = 0 : i64, tpu.core_type = #tpu.core_type<tc>, window_params = [{transform_indices = @transform_0, window_bounds = array<i64: 2, 4, 256>}, {transform_indices = @transform_1, window_bounds = array<i64: 4, 128>}, {transform_indices = @transform_2, window_bounds = array<i64: 4, 128>}, {transform_indices = @transform_3, window_bounds = array<i64: 2, 4, 256>}]} {
    %c0 = arith.constant 0 : index
    %c0_0 = arith.constant 0 : index
    %c0_1 = arith.constant 0 : index
    %0 = vector.load %arg1[%c0, %c0_0, %c0_1] : memref<2x4x256xf32, #tpu.memory_space<vmem>>, vector<2x4x256xf32>
    %cst = arith.constant 0.000000e+00 : f32
    %1 = vector.broadcast %cst : f32 to vector<2x4x256xf32>
    %2 = arith.cmpf ogt, %0, %1 : vector<2x4x256xf32>
    %cst_2 = arith.constant 0.000000e+00 : f32
    %3 = vector.broadcast %cst_2 : f32 to vector<2x4x256xf32>
    %4 = arith.minimumf %0, %3 : vector<2x4x256xf32>
    %5 = math.exp %4 : vector<2x4x256xf32>
    %cst_3 = arith.constant 1.000000e+00 : f32
    %6 = vector.broadcast %cst_3 : f32 to vector<2x4x256xf32>
    %7 = arith.subf %5, %6 : vector<2x4x256xf32>
    %8 = arith.select %2, %0, %7 : vector<2x4x256xi1>, vector<2x4x256xf32>
    %cst_4 = arith.constant dense<0.000000e+00> : vector<4x256xf32>
    %9 = vector.multi_reduction <add>, %8, %cst_4 [0] : vector<2x4x256xf32> to vector<4x256xf32>
    %10 = arith.mulf %8, %8 : vector<2x4x256xf32>
    %cst_5 = arith.constant dense<0.000000e+00> : vector<4x256xf32>
    %11 = vector.multi_reduction <add>, %10, %cst_5 [0] : vector<2x4x256xf32> to vector<4x256xf32>
    %cst_6 = arith.constant dense<0.000000e+00> : vector<4xf32>
    %12 = vector.multi_reduction <add>, %9, %cst_6 [1] : vector<4x256xf32> to vector<4xf32>
    %13 = vector.shape_cast %12 : vector<4xf32> to vector<4x1xf32>
    %cst_7 = arith.constant dense<0.000000e+00> : vector<4xf32>
    %14 = vector.multi_reduction <add>, %11, %cst_7 [1] : vector<4x256xf32> to vector<4xf32>
    %15 = vector.shape_cast %14 : vector<4xf32> to vector<4x1xf32>
    %cst_8 = arith.constant 0.001953125 : f32
    %16 = vector.broadcast %cst_8 : f32 to vector<4x1xf32>
    %17 = arith.mulf %13, %16 : vector<4x1xf32>
    %cst_9 = arith.constant 0.001953125 : f32
    %18 = vector.broadcast %cst_9 : f32 to vector<4x1xf32>
    %19 = arith.mulf %15, %18 : vector<4x1xf32>
    %20 = arith.mulf %17, %17 : vector<4x1xf32>
    %21 = arith.subf %19, %20 : vector<4x1xf32>
    %cst_10 = arith.constant 0.000000e+00 : f32
    %22 = vector.broadcast %cst_10 : f32 to vector<4x1xf32>
    %23 = arith.maximumf %21, %22 : vector<4x1xf32>
    %cst_11 = arith.constant 9.99999974E-6 : f32
    %24 = vector.broadcast %cst_11 : f32 to vector<4x1xf32>
    %25 = arith.addf %23, %24 : vector<4x1xf32>
    %26 = math.rsqrt %25 : vector<4x1xf32>
    %c0_12 = arith.constant 0 : index
    %c0_13 = arith.constant 0 : index
    %27 = vector.load %arg2[%c0_12, %c0_13] : memref<4x128xf32, #tpu.memory_space<vmem>>, vector<4x128xf32>
    %28 = vector.extract_strided_slice %27 {offsets = [0, 0], sizes = [4, 1], strides = [1, 1]} : vector<4x128xf32> to vector<4x1xf32>
    %c0_14 = arith.constant 0 : index
    %c0_15 = arith.constant 0 : index
    %29 = vector.load %arg3[%c0_14, %c0_15] : memref<4x128xf32, #tpu.memory_space<vmem>>, vector<4x128xf32>
    %30 = vector.extract_strided_slice %29 {offsets = [0, 0], sizes = [4, 1], strides = [1, 1]} : vector<4x128xf32> to vector<4x1xf32>
    %31 = arith.mulf %28, %26 : vector<4x1xf32>
    %32 = arith.mulf %17, %31 : vector<4x1xf32>
    %33 = arith.subf %30, %32 : vector<4x1xf32>
    %34 = vector.shape_cast %31 : vector<4x1xf32> to vector<1x4x1xf32>
    %35 = vector.broadcast %34 : vector<1x4x1xf32> to vector<2x4x256xf32>
    %36 = arith.mulf %8, %35 : vector<2x4x256xf32>
    %37 = vector.shape_cast %33 : vector<4x1xf32> to vector<1x4x1xf32>
    %38 = vector.broadcast %37 : vector<1x4x1xf32> to vector<2x4x256xf32>
    %39 = arith.addf %36, %38 : vector<2x4x256xf32>
    %c0_16 = arith.constant 0 : index
    %c0_17 = arith.constant 0 : index
    %c0_18 = arith.constant 0 : index
    %40 = vector.load %arg4[%c0_16, %c0_17, %c0_18] : memref<2x4x256xf32, #tpu.memory_space<vmem>>, vector<2x4x256xf32>
    tpu.vector_store %arg4[%c0_16, %c0_17, %c0_18], %39 {strides = array<i32>} : memref<2x4x256xf32, #tpu.memory_space<vmem>>, vector<2x4x256xf32>,
    return
  }
  func.func @transform_0(%arg0: i32) -> (i32, i32, i32) {
    %c0_i32 = arith.constant 0 : i32
    %c0_i32_0 = arith.constant 0 : i32
    %c0_i32_1 = arith.constant 0 : i32
    return %c0_i32, %arg0, %c0_i32_0 : i32, i32, i32
  }
  func.func @transform_1(%arg0: i32) -> (i32, i32) {
    %c0_i32 = arith.constant 0 : i32
    %c0_i32_0 = arith.constant 0 : i32
    return %arg0, %c0_i32 : i32, i32
  }
  func.func @transform_2(%arg0: i32) -> (i32, i32) {
    %c0_i32 = arith.constant 0 : i32
    %c0_i32_0 = arith.constant 0 : i32
    return %arg0, %c0_i32 : i32, i32
  }
  func.func @transform_3(%arg0: i32) -> (i32, i32, i32) {
    %c0_i32 = arith.constant 0 : i32
    %c0_i32_0 = arith.constant 0 : i32
    %c0_i32_1 = arith.constant 0 : i32
    return %c0_i32, %arg0, %c0_i32_0 : i32, i32, i32
  }
}

</mosaic_0001>

<llo_original>
// kernel: tpu_custom_call.1
$region0: #{tpu_custom_call.1}
  #allocation0 [shape = 'u32[]', space=smem, size = 0x4, offset = 0x4, fixed_abs, tag = 'smem constant byte address 0x4 - core index']
  #allocation1 [shape = 'u32[144,128]{1,0:T(1,128)}', space=vmem, size = 0x12000, scoped, tag = 'internal scratch']
  %s0 = inlined_call_operand.hbm [shape: f32[2,4,256], index: 0, kind: input, shape index: {}]
  %s1 = inlined_call_operand.hbm [shape: f32[4,128], index: 1, kind: input, shape index: {}]
  %s2 = inlined_call_operand.vmem [shape: f32[4,128], index: 2, kind: input, shape index: {}]
  %s3 = inlined_call_operand.hbm [shape: f32[2,4,256], index: 3, kind: output, shape index: {}]
  %s4 = sld [smem:[#allocation0]]
  $region30: #{tpu_custom_call.1} parent=0
    _
  %s6 = ssub.s32 1, %s4
  %s7 = scalar_select 0, %s6, %s4
  $region1: #{tpu_custom_call.1} parent=0
    #allocation2 [shape = 'u8[8192]{0}', space=vmem, size = 0x2000, scoped, tag = 'input window, operand 0, single buffered']
    #allocation3 [shape = 's32[1]{0}', space=sflag, size = 0x4, scoped, tag = 'scoped memory for tpu_custom_call.1']
    #allocation4 [shape = 's32[1]{0}', space=sflag, size = 0x4, scoped, tag = 'scoped memory for tpu_custom_call.1']
    #allocation5 [shape = 'u8[2048]{0}', space=vmem, size = 0x800, scoped, tag = 'input window, operand 1, single buffered']
    #allocation6 [shape = 's32[1]{0}', space=sflag, size = 0x4, scoped, tag = 'scoped memory for tpu_custom_call.1']
    #allocation7 [shape = 'u8[8192]{0}', space=vmem, size = 0x2000, scoped, tag = 'output window, operand 0, single buffered']
    %8 = vsyncpa [#allocation3], 0
    %9 = vsyncpa [#allocation6], 0
    %10 = vsyncpa [#allocation4], 0
    // Predicated region
    $region2: #{tpu_custom_call.1} parent=1 // pred_check
      _
    $region3: #{tpu_custom_call.1} parent=1 // pred_check_branch
      %12 = sbr.rel (0) target = $region5
    $region4: #{tpu_custom_call.1} parent=1 // pred_region
      %s14 = ssub.s32 256, 256
      %15 = vsyncadd [#allocation3], %s14
      %s16 = sshll.u32 [#allocation2], 4
      %s17 = int_to_ptr.vmem [resolvable:$true] %s16
      %22 = dma.hbm_to_vmem [thread:$0]  %s0, 256, %s17, [#allocation3], 128, 128, 8
    $region5: #{tpu_custom_call.1} parent=1 // pred_fallthru
      _
    // Predicated region
    $region6: #{tpu_custom_call.1} parent=1 // pred_check
      _
    $region7: #{tpu_custom_call.1} parent=1 // pred_check_branch
      %24 = sbr.rel (0) target = $region9
    $region8: #{tpu_custom_call.1} parent=1 // pred_region
      %s26 = ssub.s32 64, 64
      %27 = vsyncadd [#allocation6], %s26
      %s29 = sshll.u32 [#allocation5], 4
      %s30 = int_to_ptr.vmem [resolvable:$true] %s29
      %32 = dma.hbm_to_vmem [thread:$0]  %s1, 64, %s30, [#allocation6]
    $region9: #{tpu_custom_call.1} parent=1 // pred_fallthru
      _
    // Predicated region
    $region10: #{tpu_custom_call.1} parent=1 // pred_check
      _
    $region11: #{tpu_custom_call.1} parent=1 // pred_check_branch
      %34 = sbr.rel (0) target = $region13
    $region12: #{tpu_custom_call.1} parent=1 // pred_region
      _
    $region13: #{tpu_custom_call.1} parent=1 // pred_fallthru
      _
    // Predicated region
    $region14: #{tpu_custom_call.1} parent=1 // pred_check
      _
    $region15: #{tpu_custom_call.1} parent=1 // pred_check_branch
      %36 = sbr.rel (0) target = $region17
    $region16: #{tpu_custom_call.1} parent=1 // pred_region
      %37 = dma.done [#allocation3], 256
    $region17: #{tpu_custom_call.1} parent=1 // pred_fallthru
      _
    // Predicated region
    $region18: #{tpu_custom_call.1} parent=1 // pred_check
      _
    $region19: #{tpu_custom_call.1} parent=1 // pred_check_branch
      %39 = sbr.rel (0) target = $region21
    $region20: #{tpu_custom_call.1} parent=1 // pred_region
      %40 = dma.done [#allocation6], 64
    $region21: #{tpu_custom_call.1} parent=1 // pred_fallthru
      _
    %v41 = vld [vmem:[#allocation2] sm:$0xff]
    %v42 = vld [vmem:[#allocation2 + $0x8] sm:$0xff]
    %vm43 = vcmp.gt.f32.partialorder %v41, 0.0
    %vm44 = vcmp.gt.f32.partialorder %v42, 0.0
    %v45 = vmin.f32 %v41, 0.0
    %v46 = vmin.f32 %v42, 0.0
    %v47 = vmul.f32 %v45, 1.442695
    %v48 = vpow.pop %v47
    %v49 = vmul.f32 %v46, 1.442695
    %v50 = vpow.pop %v49
    %v51 = vsub.f32 %v48, 1.0
    %v52 = vsub.f32 %v50, 1.0
    %v53 = vsel %vm43, %v41, %v51
    %v54 = vsel %vm44, %v42, %v52
    %v57 = vcombine.high %v53, %v53
    %v58 = vcombine.high %v54, %v54
    %vm61 = vcmask 1043456
    %v62 = vsel %vm61, %v53, 0.0
    %v63 = vsel %vm61, %v54, 0.0
    %v64 = vadd.f32 %v62, %v63
    %v65 = vsel %vm61, %v57, 0.0
    %v66 = vsel %vm61, %v58, 0.0
    %v67 = vadd.f32 %v65, %v66
    %v68 = vmul.f32 %v53, %v53
    %v69 = vmul.f32 %v54, %v54
    %v72 = vcombine.high %v68, %v68
    %v73 = vcombine.high %v69, %v69
    %v76 = vsel %vm61, %v68, 0.0
    %v77 = vsel %vm61, %v69, 0.0
    %v78 = vadd.f32 %v76, %v77
    %v79 = vsel %vm61, %v72, 0.0
    %v80 = vsel %vm61, %v73, 0.0
    %v81 = vadd.f32 %v79, %v80
    %v82 = vsel %vm61, %v64, 0.0
    %v83 = vsel %vm61, %v67, 0.0
    %v84 = vadd.f32 %v82, %v83
    %85 = vadd.xlane.f32.xlu0 %v84
    %v86 = vpop.xlane.xlu0 %85
    %v87 = vsel %vm61, %v78, 0.0
    %v88 = vsel %vm61, %v81, 0.0
    %v89 = vadd.f32 %v87, %v88
    %90 = vadd.xlane.f32.xlu0 %v89
    %v91 = vpop.xlane.xlu0 %90
    %v92 = vmul.f32 %v86, 0.001953125
    %v93 = vmul.f32 %v91, 0.001953125
    %v94 = vmul.f32 %v92, %v92
    %v95 = vsub.f32 %v93, %v94
    %v96 = vmax.f32 %v95, 0.0
    %v97 = vadd.f32 %v96, 1e-05
    %v98 = vrsqrt.pop %v97
    %v99 = vld [vmem:[#allocation5] sm:$0xf]
    %v100 = vld [vmem:[%s2] sm:$0xf]
    %v101 = vmul.f32 %v99, %v98
    %v102 = vmul.f32 %v92, %v101
    %v103 = vsub.f32 %v100, %v102
    %105 = vset.pattern.permute.xlu0 0
    %106 = vperm.xlu0 %105, %v101
    %v107 = vpop.permute.xlu0 %106
    %v109 = vunpack.c.l.s4 839922192
    %v110 = vunpack.c.0.s8 %v109
    %v111 = vlaneseq
    %v112 = vshrl.u32 %v111, 7
    %v113 = vsub.s32 %v110, %v112
    %v114 = vrot.slane %v107, %v113
    %v116 = vmul.f32 %v53, %v114
    %v117 = vmul.f32 %v54, %v114
    %119 = vset.pattern.permute.xlu0 0
    %120 = vperm.xlu0 %119, %v103
    %v121 = vpop.permute.xlu0 %120
    %v123 = vunpack.c.l.s4 839922192
    %v124 = vunpack.c.0.s8 %v123
    %v125 = vlaneseq
    %v126 = vshrl.u32 %v125, 7
    %v127 = vsub.s32 %v124, %v126
    %v128 = vrot.slane %v121, %v127
    %v130 = vadd.f32 %v116, %v128
    %v131 = vadd.f32 %v117, %v128
    %132 = vst [vmem:[#allocation7] sm:$0xff] %v130
    %133 = vst [vmem:[#allocation7 + $0x8] sm:$0xff] %v131
    // Predicated region
    $region22: #{tpu_custom_call.1} parent=1 // pred_check
      _
    $region23: #{tpu_custom_call.1} parent=1 // pred_check_branch
      %135 = sbr.rel (0) target = $region25
    $region24: #{tpu_custom_call.1} parent=1 // pred_region
      %s137 = ssub.s32 256, 256
      %138 = vsyncadd [#allocation4], %s137
      %s139 = sshll.u32 [#allocation7], 4
      %s140 = int_to_ptr.vmem [resolvable:$true] %s139
      %145 = dma.vmem_to_hbm [thread:$0]  %s140, 256, %s3, [#allocation4], 128, 128, 8
    $region25: #{tpu_custom_call.1} parent=1 // pred_fallthru
      _
    // Predicated region
    $region26: #{tpu_custom_call.1} parent=1 // pred_check
      _
    $region27: #{tpu_custom_call.1} parent=1 // pred_check_branch
      %147 = sbr.rel (0) target = $region29
    $region28: #{tpu_custom_call.1} parent=1 // pred_region
      %148 = dma.done [#allocation4], 256
    $region29: #{tpu_custom_call.1} parent=1 // pred_fallthru
      _
    %149 = vsyncpa [#allocation3], 1
    %150 = vsyncpa [#allocation6], 1
    %151 = vsyncpa [#allocation4], 1

</llo_original>
